<compile_context>
chip_gen: v7x
topology: tpu7x:2x2x1
jax: 0.10.0
libtpu: 0.0.40
codegen_flags: <defaults>
</compile_context>

<pallas_src>
import functools

import jax
import jax.numpy as jnp
from jax.experimental import pallas as pl
from jax.experimental.pallas import tpu as pltpu

IN_DIM = 28 * 28   # 784
HID = 200
OUT = 200
HID_P = 256        # lane-dense padded hidden width
OUT_P = 256        # lane-dense padded output width
DEFAULT_TB = 512   # batch-tile cap (sweepable); ~6 MB f32 working set


def _round_up(x, m):
    return (x + m - 1) // m * m


def prepare_params(w1, b1, w2, b2, *, cast_bf16=False):
    """One-time prep: zero-pad the 200-wide dims to 256 (exact: relu(0+0)=0
    contributes nothing downstream) and optionally cast weights to bf16.
    Call once at init; do NOT call per forward."""
    w1p = jnp.pad(w1, ((0, 0), (0, HID_P - HID)))                            # (784, 256)
    b1p = jnp.pad(b1.reshape(1, HID), ((0, 0), (0, HID_P - HID))).astype(jnp.float32)
    w2p = jnp.pad(w2, ((0, HID_P - HID), (0, OUT_P - OUT)))                  # (256, 256)
    b2p = jnp.pad(b2.reshape(1, OUT), ((0, 0), (0, OUT_P - OUT))).astype(jnp.float32)
    if cast_bf16:
        w1p = w1p.astype(jnp.bfloat16)
        w2p = w2p.astype(jnp.bfloat16)
    return w1p, b1p, w2p, b2p


def mlp_header_kernel(x_ref, w1_ref, b1_ref, w2_ref, b2_ref, o_ref):
    # In-kernel cast of x to the weight dtype (no-op for f32, VPU-only for
    # bf16 — avoids a separate XLA astype pass over x in HBM).
    xb = x_ref[...].astype(w1_ref.dtype)
    # Layer 1: (TB, 784) @ (784, 256) + (1, 256) -> ReLU, f32 accumulation.
    h = jnp.dot(xb, w1_ref[...], preferred_element_type=jnp.float32)
    h = jnp.maximum(h + b1_ref[...], 0.0)
    # Layer 2: (TB, 256) @ (256, 256) + (1, 256) -> ReLU.
    o = jnp.dot(h.astype(w2_ref.dtype), w2_ref[...],
                preferred_element_type=jnp.float32)
    o_ref[...] = jnp.maximum(o + b2_ref[...], 0.0).astype(o_ref.dtype)


def _pick_tb(B):
    if B <= 256:
        return max(8, _round_up(B, 8))
    # Guarantee >= 2 grid steps so dimension_semantics=("parallel",) can use
    # both v7x TensorCores; cap at DEFAULT_TB to keep VMEM comfortable on all
    # generations (v5e 16 MiB scoped default, v7x 64 MiB physical).
    return min(DEFAULT_TB, _round_up(pl.cdiv(B, 2), 8))


@functools.partial(jax.jit, static_argnames=("tb", "trim"))
def mlp_header_forward(x_nchw, w1p, b1p, w2p, b2p, *, tb=None, trim=True):
    """x_nchw: (B, 1, 28, 28) f32.  w*/b* are the *prepared* (padded) params
    from prepare_params().  Returns (B, 200) f32 (or (B, 256) if trim=False)."""
    B = x_nchw.shape[0]
    x = x_nchw.reshape(B, IN_DIM)  # same semantics as torch .view(-1, 784)

    if tb is None:
        tb = _pick_tb(B)
    grid = (pl.cdiv(B, tb),)       # ragged last block: padded loads, masked stores

    x_bytes = x.dtype.itemsize
    w_bytes = w1p.dtype.itemsize
    flops = 2 * B * (IN_DIM * HID_P + HID_P * OUT_P)
    bytes_accessed = (
        B * IN_DIM * x_bytes
        + (IN_DIM * HID_P + HID_P * OUT_P) * w_bytes
        + (HID_P + OUT_P) * 4
        + B * OUT_P * 4
    )

    out_padded = pl.pallas_call(
        mlp_header_kernel,
        out_shape=jax.ShapeDtypeStruct((B, OUT_P), jnp.float32),
        grid=grid,
        in_specs=[
            pl.BlockSpec((tb, IN_DIM), lambda i: (i, 0)),      # x tile (double-buffered)
            pl.BlockSpec((IN_DIM, HID_P), lambda i: (0, 0)),   # W1 resident
            pl.BlockSpec((1, HID_P), lambda i: (0, 0)),        # b1 resident
            pl.BlockSpec((HID_P, OUT_P), lambda i: (0, 0)),    # W2 resident
            pl.BlockSpec((1, OUT_P), lambda i: (0, 0)),        # b2 resident
        ],
        out_specs=pl.BlockSpec((tb, OUT_P), lambda i: (i, 0)),
        compiler_params=pltpu.CompilerParams(
            dimension_semantics=("parallel",),
            vmem_limit_bytes=32 << 20),
        cost_estimate=pl.CostEstimate(
            flops=flops, transcendentals=0, bytes_accessed=bytes_accessed),
    )(x, w1p, b1p, w2p, b2p)

    if trim:
        # 256 -> 200 trim; fuses into the consumer under jit.  Pass trim=False
        # to hand the lane-padded buffer (trailing zeros) straight downstream.
        return out_padded[:, :OUT]
    return out_padded


def init_params(key):
    """Deterministic init mimicking torch.nn.Linear default (uniform(-1/sqrt(fan_in), +))."""
    k1, k2, k3, k4 = jax.random.split(key, 4)
    bound1 = 1.0 / jnp.sqrt(IN_DIM)
    bound2 = 1.0 / jnp.sqrt(HID)
    # Stored as (in_features, out_features) == torch weight.T
    w1 = jax.random.uniform(k1, (IN_DIM, HID), jnp.float32, -bound1, bound1)
    b1 = jax.random.uniform(k2, (HID,), jnp.float32, -bound1, bound1)
    w2 = jax.random.uniform(k3, (HID, OUT), jnp.float32, -bound2, bound2)
    b2 = jax.random.uniform(k4, (OUT,), jnp.float32, -bound2, bound2)
    return w1, b1, w2, b2


def reference_forward(x_nchw, w1, b1, w2, b2):
    x = x_nchw.reshape(x_nchw.shape[0], IN_DIM)
    h = jnp.maximum(x @ w1 + b1, 0.0)
    return jnp.maximum(h @ w2 + b2, 0.0)


if __name__ == "__main__":
    key = jax.random.PRNGKey(0)
    kx, kx2, kp = jax.random.split(key, 3)
    w1, b1, w2, b2 = init_params(kp)

    # Prepare (pad) weights ONCE, outside the per-call forward.
    params_f32 = prepare_params(w1, b1, w2, b2, cast_bf16=False)

    # Test 1: small batch (single grid step, exercises lane padding).
    B = 8
    x = jax.random.normal(kx, (B, 1, 28, 28), jnp.float32)  # NCHW input
    out = jax.block_until_ready(mlp_header_forward(x, *params_f32))
    ref = reference_forward(x, w1, b1, w2, b2)
    assert out.shape == (B, OUT), out.shape
    assert jnp.allclose(out, ref, atol=1e-4, rtol=1e-4), "mismatch vs reference (B=8)"

    # Test 2: non-divisible batch with explicit tile -> multi-step grid with a
    # ragged last block (padded loads / masked stores), no wrapper-side pad.
    B2 = 200
    x2 = jax.random.normal(kx2, (B2, 1, 28, 28), jnp.float32)
    out2 = jax.block_until_ready(mlp_header_forward(x2, *params_f32, tb=64))
    ref2 = reference_forward(x2, w1, b1, w2, b2)
    assert out2.shape == (B2, OUT), out2.shape
    assert jnp.allclose(out2, ref2, atol=1e-4, rtol=1e-4), "mismatch vs reference (B=200)"

    # Test 3: bf16 weight path (in-kernel x cast, f32 accumulation) — looser tol.
    params_bf16 = prepare_params(w1, b1, w2, b2, cast_bf16=True)
    out3 = jax.block_until_ready(mlp_header_forward(x2, *params_bf16, tb=64))
    assert out3.shape == (B2, OUT), out3.shape
    assert jnp.allclose(out3, ref2, atol=5e-2, rtol=5e-2), "mismatch vs reference (bf16)"

    print("KERNEL_OK")
</pallas_src>

<mosaic_0001>
module attributes {stable_mosaic.version = 11 : i64} {
  func.func @mlp_header_kernel(%arg0: i32, %arg1: memref<8x784xf32, #tpu.memory_space<vmem>>, %arg2: memref<784x256xf32, #tpu.memory_space<vmem>>, %arg3: memref<1x256xf32, #tpu.memory_space<vmem>>, %arg4: memref<256x256xf32, #tpu.memory_space<vmem>>, %arg5: memref<1x256xf32, #tpu.memory_space<vmem>>, %arg6: memref<8x256xf32, #tpu.memory_space<vmem>>) attributes {dimension_semantics = [#tpu.dimension_semantics<parallel>], iteration_bounds = array<i64: 1>, scalar_prefetch = 0 : i64, scratch_operands = 0 : i64, tpu.core_type = #tpu.core_type<tc>, window_params = [{transform_indices = @transform_0, window_bounds = array<i64: 8, 784>}, {pipeline_mode = #tpu.pipeline_mode<synchronous>, transform_indices = @transform_1, window_bounds = array<i64: 784, 256>}, {pipeline_mode = #tpu.pipeline_mode<synchronous>, transform_indices = @transform_2, window_bounds = array<i64: 1, 256>}, {pipeline_mode = #tpu.pipeline_mode<synchronous>, transform_indices = @transform_3, window_bounds = array<i64: 256, 256>}, {pipeline_mode = #tpu.pipeline_mode<synchronous>, transform_indices = @transform_4, window_bounds = array<i64: 1, 256>}, {transform_indices = @transform_5, window_bounds = array<i64: 8, 256>}]} {
    %c0 = arith.constant 0 : index
    %c0_0 = arith.constant 0 : index
    %0 = vector.load %arg1[%c0, %c0_0] : memref<8x784xf32, #tpu.memory_space<vmem>>, vector<8x784xf32>
    %c0_1 = arith.constant 0 : index
    %c0_2 = arith.constant 0 : index
    %1 = vector.load %arg2[%c0_1, %c0_2] : memref<784x256xf32, #tpu.memory_space<vmem>>, vector<784x256xf32>
    %cst = arith.constant dense<0.000000e+00> : vector<8x256xf32>
    %2 = tpu.matmul %0, %1, %cst {dimension_numbers = #tpu.dot_dimension_numbers<[1], [0], [0], [1], [0, 0, 1, 1], [], []>} : vector<8x784xf32>, vector<784x256xf32>, vector<8x256xf32> -> vector<8x256xf32>
    %c0_3 = arith.constant 0 : index
    %c0_4 = arith.constant 0 : index
    %3 = vector.load %arg3[%c0_3, %c0_4] : memref<1x256xf32, #tpu.memory_space<vmem>>, vector<1x256xf32>
    %4 = vector.broadcast %3 : vector<1x256xf32> to vector<8x256xf32>
    %5 = arith.addf %2, %4 : vector<8x256xf32>
    %cst_5 = arith.constant 0.000000e+00 : f32
    %6 = vector.broadcast %cst_5 : f32 to vector<8x256xf32>
    %7 = arith.maximumf %5, %6 : vector<8x256xf32>
    %c0_6 = arith.constant 0 : index
    %c0_7 = arith.constant 0 : index
    %8 = vector.load %arg4[%c0_6, %c0_7] : memref<256x256xf32, #tpu.memory_space<vmem>>, vector<256x256xf32>
    %cst_8 = arith.constant dense<0.000000e+00> : vector<8x256xf32>
    %9 = tpu.matmul %7, %8, %cst_8 {dimension_numbers = #tpu.dot_dimension_numbers<[1], [0], [0], [1], [0, 0, 1, 1], [], []>} : vector<8x256xf32>, vector<256x256xf32>, vector<8x256xf32> -> vector<8x256xf32>
    %c0_9 = arith.constant 0 : index
    %c0_10 = arith.constant 0 : index
    %10 = vector.load %arg5[%c0_9, %c0_10] : memref<1x256xf32, #tpu.memory_space<vmem>>, vector<1x256xf32>
    %11 = vector.broadcast %10 : vector<1x256xf32> to vector<8x256xf32>
    %12 = arith.addf %9, %11 : vector<8x256xf32>
    %cst_11 = arith.constant 0.000000e+00 : f32
    %13 = vector.broadcast %cst_11 : f32 to vector<8x256xf32>
    %14 = arith.maximumf %12, %13 : vector<8x256xf32>
    %c0_12 = arith.constant 0 : index
    %c0_13 = arith.constant 0 : index
    %15 = vector.load %arg6[%c0_12, %c0_13] : memref<8x256xf32, #tpu.memory_space<vmem>>, vector<8x256xf32>
    tpu.vector_store %arg6[%c0_12, %c0_13], %14 {strides = array<i32>} : memref<8x256xf32, #tpu.memory_space<vmem>>, vector<8x256xf32>,
    return
  }
  func.func @transform_0(%arg0: i32) -> (i32, i32) {
    %c0_i32 = arith.constant 0 : i32
    %c0_i32_0 = arith.constant 0 : i32
    return %arg0, %c0_i32 : i32, i32
  }
  func.func @transform_1(%arg0: i32) -> (i32, i32) {
    %c0_i32 = arith.constant 0 : i32
    %c0_i32_0 = arith.constant 0 : i32
    %c0_i32_1 = arith.constant 0 : i32
    return %c0_i32, %c0_i32_0 : i32, i32
  }
  func.func @transform_2(%arg0: i32) -> (i32, i32) {
    %c0_i32 = arith.constant 0 : i32
    %c0_i32_0 = arith.constant 0 : i32
    %c0_i32_1 = arith.constant 0 : i32
    return %c0_i32, %c0_i32_0 : i32, i32
  }
  func.func @transform_3(%arg0: i32) -> (i32, i32) {
    %c0_i32 = arith.constant 0 : i32
    %c0_i32_0 = arith.constant 0 : i32
    %c0_i32_1 = arith.constant 0 : i32
    return %c0_i32, %c0_i32_0 : i32, i32
  }
  func.func @transform_4(%arg0: i32) -> (i32, i32) {
    %c0_i32 = arith.constant 0 : i32
    %c0_i32_0 = arith.constant 0 : i32
    %c0_i32_1 = arith.constant 0 : i32
    return %c0_i32, %c0_i32_0 : i32, i32
  }
  func.func @transform_5(%arg0: i32) -> (i32, i32) {
    %c0_i32 = arith.constant 0 : i32
    %c0_i32_0 = arith.constant 0 : i32
    return %arg0, %c0_i32 : i32, i32
  }
}

</mosaic_0001>

<llo_original>
// kernel: mlp_header_forward.1
$region0: #{mlp_header_forward.1}
  #allocation0 [shape = 'u32[]', space=smem, size = 0x4, offset = 0x4, fixed_abs, tag = 'smem constant byte address 0x4 - core index']
  #allocation1 [shape = 'u32[144,128]{1,0:T(1,128)}', space=vmem, size = 0x12000, scoped, tag = 'internal scratch']
  %s0 = inlined_call_operand.vmem [shape: f32[8,784], index: 0, kind: input, shape index: {}]
  %s1 = inlined_call_operand.hbm [shape: f32[784,256], index: 1, kind: input, shape index: {}]
  %s2 = inlined_call_operand.vmem [shape: f32[1,256], index: 2, kind: input, shape index: {}]
  %s3 = inlined_call_operand.vmem [shape: f32[256,256], index: 3, kind: input, shape index: {}]
  %s4 = inlined_call_operand.vmem [shape: f32[1,256], index: 4, kind: input, shape index: {}]
  %s5 = inlined_call_operand.hbm [shape: f32[8,256], index: 5, kind: output, shape index: {}]
  %s6 = sld [smem:[#allocation0]]
  $region34: #{mlp_header_forward.1} parent=0
    _
  %s8 = ssub.s32 1, %s6
  %s9 = scalar_select 0, %s8, %s6
  $region1: #{mlp_header_forward.1} parent=0
    #allocation2 [shape = 'u8[802816]{0}', space=vmem, size = 0xc4000, scoped, tag = 'input window, operand 1, single buffered']
    #allocation3 [shape = 's32[1]{0}', space=sflag, size = 0x4, scoped, tag = 'scoped memory for mlp_header_forward.1']
    #allocation4 [shape = 's32[1]{0}', space=sflag, size = 0x4, scoped, tag = 'scoped memory for mlp_header_forward.1']
    #allocation5 [shape = 'u8[8192]{0}', space=vmem, size = 0x2000, scoped, tag = 'output window, operand 0, single buffered']
    %10 = vsyncpa [#allocation3], 0
    %11 = vsyncpa [#allocation4], 0
    // Predicated region
    $region2: #{mlp_header_forward.1} parent=1 // pred_check
      _
    $region3: #{mlp_header_forward.1} parent=1 // pred_check_branch
      %13 = sbr.rel (0) target = $region5
    $region4: #{mlp_header_forward.1} parent=1 // pred_region
      _
    $region5: #{mlp_header_forward.1} parent=1 // pred_fallthru
      _
    // Predicated region
    $region6: #{mlp_header_forward.1} parent=1 // pred_check
      _
    $region7: #{mlp_header_forward.1} parent=1 // pred_check_branch
      %15 = sbr.rel (0) target = $region9
    $region8: #{mlp_header_forward.1} parent=1 // pred_region
      %s17 = ssub.s32 25088, 25088
      %18 = vsyncadd [#allocation3], %s17
      %s19 = sshll.u32 [#allocation2], 4
      %s20 = int_to_ptr.vmem [resolvable:$true] %s19
      %25 = dma.hbm_to_vmem [thread:$0]  %s1, 25088, %s20, [#allocation3], 256, 256, 16
    $region9: #{mlp_header_forward.1} parent=1 // pred_fallthru
      _
    // Predicated region
    $region10: #{mlp_header_forward.1} parent=1 // pred_check
      _
    $region11: #{mlp_header_forward.1} parent=1 // pred_check_branch
      %27 = sbr.rel (0) target = $region13
    $region12: #{mlp_header_forward.1} parent=1 // pred_region
      _
    $region13: #{mlp_header_forward.1} parent=1 // pred_fallthru
      _
    // Predicated region
    $region14: #{mlp_header_forward.1} parent=1 // pred_check
      _
    $region15: #{mlp_header_forward.1} parent=1 // pred_check_branch
      %29 = sbr.rel (0) target = $region17
    $region16: #{mlp_header_forward.1} parent=1 // pred_region
      _
    $region17: #{mlp_header_forward.1} parent=1 // pred_fallthru
      _
    // Predicated region
    $region18: #{mlp_header_forward.1} parent=1 // pred_check
      _
    $region19: #{mlp_header_forward.1} parent=1 // pred_check_branch
      %31 = sbr.rel (0) target = $region21
    $region20: #{mlp_header_forward.1} parent=1 // pred_region
      _
    $region21: #{mlp_header_forward.1} parent=1 // pred_fallthru
      _
    // Predicated region
    $region22: #{mlp_header_forward.1} parent=1 // pred_check
      _
    $region23: #{mlp_header_forward.1} parent=1 // pred_check_branch
      %33 = sbr.rel (0) target = $region25
    $region24: #{mlp_header_forward.1} parent=1 // pred_region
      %34 = dma.done [#allocation3], 25088
    $region25: #{mlp_header_forward.1} parent=1 // pred_fallthru
      _
    %v35 = vld [vmem:[%s0] sm:$0xff]
    %v36 = vld [vmem:[%s0 + $0x8] sm:$0xff]
    %v37 = vld [vmem:[%s0 + $0x10] sm:$0xff]
    %v38 = vld [vmem:[%s0 + $0x18] sm:$0xff]
    %v39 = vld [vmem:[%s0 + $0x20] sm:$0xff]
    %v40 = vld [vmem:[%s0 + $0x28] sm:$0xff]
    %v41 = vld [vmem:[%s0 + $0x30] sm:$0xff]
    %v42 = vld [vmem:[#allocation2] sm:$0xff]
    %v43 = vld [vmem:[#allocation2 + $0x8] sm:$0xff]
    %v44 = vld [vmem:[#allocation2 + $0x10] sm:$0xff]
    %v45 = vld [vmem:[#allocation2 + $0x18] sm:$0xff]
    %v46 = vld [vmem:[#allocation2 + $0x20] sm:$0xff]
    %v47 = vld [vmem:[#allocation2 + $0x28] sm:$0xff]
    %v48 = vld [vmem:[#allocation2 + $0x30] sm:$0xff]
    %v49 = vld [vmem:[#allocation2 + $0x38] sm:$0xff]
    %v50 = vld [vmem:[#allocation2 + $0x40] sm:$0xff]
    %v51 = vld [vmem:[#allocation2 + $0x48] sm:$0xff]
    %v52 = vld [vmem:[#allocation2 + $0x50] sm:$0xff]
    %v53 = vld [vmem:[#allocation2 + $0x58] sm:$0xff]
    %v54 = vld [vmem:[#allocation2 + $0x60] sm:$0xff]
    %v55 = vld [vmem:[#allocation2 + $0x68] sm:$0xff]
    %v56 = vld [vmem:[#allocation2 + $0x70] sm:$0xff]
    %v57 = vld [vmem:[#allocation2 + $0x78] sm:$0xff]
    %v58 = vld [vmem:[#allocation2 + $0x80] sm:$0xff]
    %v59 = vld [vmem:[#allocation2 + $0x88] sm:$0xff]
    %v60 = vld [vmem:[#allocation2 + $0x90] sm:$0xff]
    %v61 = vld [vmem:[#allocation2 + $0x98] sm:$0xff]
    %v62 = vld [vmem:[#allocation2 + $0xa0] sm:$0xff]
    %v63 = vld [vmem:[#allocation2 + $0xa8] sm:$0xff]
    %v64 = vld [vmem:[#allocation2 + $0xb0] sm:$0xff]
    %v65 = vld [vmem:[#allocation2 + $0xb8] sm:$0xff]
    %v66 = vld [vmem:[#allocation2 + $0xc0] sm:$0xff]
    %v67 = vld [vmem:[#allocation2 + $0xc8] sm:$0xff]
    %v68 = vld [vmem:[#allocation2 + $0xd0] sm:$0xff]
    %v69 = vld [vmem:[#allocation2 + $0xd8] sm:$0xff]
    %v70 = vld [vmem:[#allocation2 + $0xe0] sm:$0xff]
    %v71 = vld [vmem:[#allocation2 + $0xe8] sm:$0xff]
    %v72 = vld [vmem:[#allocation2 + $0xf0] sm:$0xff]
    %v73 = vld [vmem:[#allocation2 + $0xf8] sm:$0xff]
    %v74 = vld [vmem:[#allocation2 + $0x100] sm:$0xff]
    %v75 = vld [vmem:[#allocation2 + $0x108] sm:$0xff]
    %v76 = vld [vmem:[#allocation2 + $0x110] sm:$0xff]
    %v77 = vld [vmem:[#allocation2 + $0x118] sm:$0xff]
    %v78 = vld [vmem:[#allocation2 + $0x120] sm:$0xff]
    %v79 = vld [vmem:[#allocation2 + $0x128] sm:$0xff]
    %v80 = vld [vmem:[#allocation2 + $0x130] sm:$0xff]
    %v81 = vld [vmem:[#allocation2 + $0x138] sm:$0xff]
    %v82 = vld [vmem:[#allocation2 + $0x140] sm:$0xff]
    %v83 = vld [vmem:[#allocation2 + $0x148] sm:$0xff]
    %v84 = vld [vmem:[#allocation2 + $0x150] sm:$0xff]
    %v85 = vld [vmem:[#allocation2 + $0x158] sm:$0xff]
    %v86 = vld [vmem:[#allocation2 + $0x160] sm:$0xff]
    %v87 = vld [vmem:[#allocation2 + $0x168] sm:$0xff]
    %v88 = vld [vmem:[#allocation2 + $0x170] sm:$0xff]
    %v89 = vld [vmem:[#allocation2 + $0x178] sm:$0xff]
    %v90 = vld [vmem:[#allocation2 + $0x180] sm:$0xff]
    %v91 = vld [vmem:[#allocation2 + $0x188] sm:$0xff]
    %v92 = vld [vmem:[#allocation2 + $0x190] sm:$0xff]
    %v93 = vld [vmem:[#allocation2 + $0x198] sm:$0xff]
    %v94 = vld [vmem:[#allocation2 + $0x1a0] sm:$0xff]
    %v95 = vld [vmem:[#allocation2 + $0x1a8] sm:$0xff]
    %v96 = vld [vmem:[#allocation2 + $0x1b0] sm:$0xff]
    %v97 = vld [vmem:[#allocation2 + $0x1b8] sm:$0xff]
    %v98 = vld [vmem:[#allocation2 + $0x1c0] sm:$0xff]
    %v99 = vld [vmem:[#allocation2 + $0x1c8] sm:$0xff]
    %v100 = vld [vmem:[#allocation2 + $0x1d0] sm:$0xff]
    %v101 = vld [vmem:[#allocation2 + $0x1d8] sm:$0xff]
    %v102 = vld [vmem:[#allocation2 + $0x1e0] sm:$0xff]
    %v103 = vld [vmem:[#allocation2 + $0x1e8] sm:$0xff]
    %v104 = vld [vmem:[#allocation2 + $0x1f0] sm:$0xff]
    %v105 = vld [vmem:[#allocation2 + $0x1f8] sm:$0xff]
    %v106 = vld [vmem:[#allocation2 + $0x200] sm:$0xff]
    %v107 = vld [vmem:[#allocation2 + $0x208] sm:$0xff]
    %v108 = vld [vmem:[#allocation2 + $0x210] sm:$0xff]
    %v109 = vld [vmem:[#allocation2 + $0x218] sm:$0xff]
    %v110 = vld [vmem:[#allocation2 + $0x220] sm:$0xff]
    %v111 = vld [vmem:[#allocation2 + $0x228] sm:$0xff]
    %v112 = vld [vmem:[#allocation2 + $0x230] sm:$0xff]
    %v113 = vld [vmem:[#allocation2 + $0x238] sm:$0xff]
    %v114 = vld [vmem:[#allocation2 + $0x240] sm:$0xff]
    %v115 = vld [vmem:[#allocation2 + $0x248] sm:$0xff]
    %v116 = vld [vmem:[#allocation2 + $0x250] sm:$0xff]
    %v117 = vld [vmem:[#allocation2 + $0x258] sm:$0xff]
    %v118 = vld [vmem:[#allocation2 + $0x260] sm:$0xff]
    %v119 = vld [vmem:[#allocation2 + $0x268] sm:$0xff]
    %v120 = vld [vmem:[#allocation2 + $0x270] sm:$0xff]
    %v121 = vld [vmem:[#allocation2 + $0x278] sm:$0xff]
    %v122 = vld [vmem:[#allocation2 + $0x280] sm:$0xff]
    %v123 = vld [vmem:[#allocation2 + $0x288] sm:$0xff]
    %v124 = vld [vmem:[#allocation2 + $0x290] sm:$0xff]
    %v125 = vld [vmem:[#allocation2 + $0x298] sm:$0xff]
    %v126 = vld [vmem:[#allocation2 + $0x2a0] sm:$0xff]
    %v127 = vld [vmem:[#allocation2 + $0x2a8] sm:$0xff]
    %v128 = vld [vmem:[#allocation2 + $0x2b0] sm:$0xff]
    %v129 = vld [vmem:[#allocation2 + $0x2b8] sm:$0xff]
    %v130 = vld [vmem:[#allocation2 + $0x2c0] sm:$0xff]
    %v131 = vld [vmem:[#allocation2 + $0x2c8] sm:$0xff]
    %v132 = vld [vmem:[#allocation2 + $0x2d0] sm:$0xff]
    %v133 = vld [vmem:[#allocation2 + $0x2d8] sm:$0xff]
    %v134 = vld [vmem:[#allocation2 + $0x2e0] sm:$0xff]
    %v135 = vld [vmem:[#allocation2 + $0x2e8] sm:$0xff]
    %v136 = vld [vmem:[#allocation2 + $0x2f0] sm:$0xff]
    %v137 = vld [vmem:[#allocation2 + $0x2f8] sm:$0xff]
    %v138 = vld [vmem:[#allocation2 + $0x300] sm:$0xff]
    %v139 = vld [vmem:[#allocation2 + $0x308] sm:$0xff]
    %v140 = vld [vmem:[#allocation2 + $0x310] sm:$0xff]
    %v141 = vld [vmem:[#allocation2 + $0x318] sm:$0xff]
    %v142 = vld [vmem:[#allocation2 + $0x320] sm:$0xff]
    %v143 = vld [vmem:[#allocation2 + $0x328] sm:$0xff]
    %v144 = vld [vmem:[#allocation2 + $0x330] sm:$0xff]
    %v145 = vld [vmem:[#allocation2 + $0x338] sm:$0xff]
    %v146 = vld [vmem:[#allocation2 + $0x340] sm:$0xff]
    %v147 = vld [vmem:[#allocation2 + $0x348] sm:$0xff]
    %v148 = vld [vmem:[#allocation2 + $0x350] sm:$0xff]
    %v149 = vld [vmem:[#allocation2 + $0x358] sm:$0xff]
    %v150 = vld [vmem:[#allocation2 + $0x360] sm:$0xff]
    %v151 = vld [vmem:[#allocation2 + $0x368] sm:$0xff]
    %v152 = vld [vmem:[#allocation2 + $0x370] sm:$0xff]
    %v153 = vld [vmem:[#allocation2 + $0x378] sm:$0xff]
    %v154 = vld [vmem:[#allocation2 + $0x380] sm:$0xff]
    %v155 = vld [vmem:[#allocation2 + $0x388] sm:$0xff]
    %v156 = vld [vmem:[#allocation2 + $0x390] sm:$0xff]
    %v157 = vld [vmem:[#allocation2 + $0x398] sm:$0xff]
    %v158 = vld [vmem:[#allocation2 + $0x3a0] sm:$0xff]
    %v159 = vld [vmem:[#allocation2 + $0x3a8] sm:$0xff]
    %v160 = vld [vmem:[#allocation2 + $0x3b0] sm:$0xff]
    %v161 = vld [vmem:[#allocation2 + $0x3b8] sm:$0xff]
    %v162 = vld [vmem:[#allocation2 + $0x3c0] sm:$0xff]
    %v163 = vld [vmem:[#allocation2 + $0x3c8] sm:$0xff]
    %v164 = vld [vmem:[#allocation2 + $0x3d0] sm:$0xff]
    %v165 = vld [vmem:[#allocation2 + $0x3d8] sm:$0xff]
    %v166 = vld [vmem:[#allocation2 + $0x3e0] sm:$0xff]
    %v167 = vld [vmem:[#allocation2 + $0x3e8] sm:$0xff]
    %v168 = vld [vmem:[#allocation2 + $0x3f0] sm:$0xff]
    %v169 = vld [vmem:[#allocation2 + $0x3f8] sm:$0xff]
    %v170 = vld [vmem:[#allocation2 + $0x400] sm:$0xff]
    %v171 = vld [vmem:[#allocation2 + $0x408] sm:$0xff]
    %v172 = vld [vmem:[#allocation2 + $0x410] sm:$0xff]
    %v173 = vld [vmem:[#allocation2 + $0x418] sm:$0xff]
    %v174 = vld [vmem:[#allocation2 + $0x420] sm:$0xff]
    %v175 = vld [vmem:[#allocation2 + $0x428] sm:$0xff]
    %v176 = vld [vmem:[#allocation2 + $0x430] sm:$0xff]
    %v177 = vld [vmem:[#allocation2 + $0x438] sm:$0xff]
    %v178 = vld [vmem:[#allocation2 + $0x440] sm:$0xff]
    %v179 = vld [vmem:[#allocation2 + $0x448] sm:$0xff]
    %v180 = vld [vmem:[#allocation2 + $0x450] sm:$0xff]
    %v181 = vld [vmem:[#allocation2 + $0x458] sm:$0xff]
    %v182 = vld [vmem:[#allocation2 + $0x460] sm:$0xff]
    %v183 = vld [vmem:[#allocation2 + $0x468] sm:$0xff]
    %v184 = vld [vmem:[#allocation2 + $0x470] sm:$0xff]
    %v185 = vld [vmem:[#allocation2 + $0x478] sm:$0xff]
    %v186 = vld [vmem:[#allocation2 + $0x480] sm:$0xff]
    %v187 = vld [vmem:[#allocation2 + $0x488] sm:$0xff]
    %v188 = vld [vmem:[#allocation2 + $0x490] sm:$0xff]
    %v189 = vld [vmem:[#allocation2 + $0x498] sm:$0xff]
    %v190 = vld [vmem:[#allocation2 + $0x4a0] sm:$0xff]
    %v191 = vld [vmem:[#allocation2 + $0x4a8] sm:$0xff]
    %v192 = vld [vmem:[#allocation2 + $0x4b0] sm:$0xff]
    %v193 = vld [vmem:[#allocation2 + $0x4b8] sm:$0xff]
    %v194 = vld [vmem:[#allocation2 + $0x4c0] sm:$0xff]
    %v195 = vld [vmem:[#allocation2 + $0x4c8] sm:$0xff]
    %v196 = vld [vmem:[#allocation2 + $0x4d0] sm:$0xff]
    %v197 = vld [vmem:[#allocation2 + $0x4d8] sm:$0xff]
    %v198 = vld [vmem:[#allocation2 + $0x4e0] sm:$0xff]
    %v199 = vld [vmem:[#allocation2 + $0x4e8] sm:$0xff]
    %v200 = vld [vmem:[#allocation2 + $0x4f0] sm:$0xff]
    %v201 = vld [vmem:[#allocation2 + $0x4f8] sm:$0xff]
    %v202 = vld [vmem:[#allocation2 + $0x500] sm:$0xff]
    %v203 = vld [vmem:[#allocation2 + $0x508] sm:$0xff]
    %v204 = vld [vmem:[#allocation2 + $0x510] sm:$0xff]
    %v205 = vld [vmem:[#allocation2 + $0x518] sm:$0xff]
    %v206 = vld [vmem:[#allocation2 + $0x520] sm:$0xff]
    %v207 = vld [vmem:[#allocation2 + $0x528] sm:$0xff]
    %v208 = vld [vmem:[#allocation2 + $0x530] sm:$0xff]
    %v209 = vld [vmem:[#allocation2 + $0x538] sm:$0xff]
    %v210 = vld [vmem:[#allocation2 + $0x540] sm:$0xff]
    %v211 = vld [vmem:[#allocation2 + $0x548] sm:$0xff]
    %v212 = vld [vmem:[#allocation2 + $0x550] sm:$0xff]
    %v213 = vld [vmem:[#allocation2 + $0x558] sm:$0xff]
    %v214 = vld [vmem:[#allocation2 + $0x560] sm:$0xff]
    %v215 = vld [vmem:[#allocation2 + $0x568] sm:$0xff]
    %v216 = vld [vmem:[#allocation2 + $0x570] sm:$0xff]
    %v217 = vld [vmem:[#allocation2 + $0x578] sm:$0xff]
    %v218 = vld [vmem:[#allocation2 + $0x580] sm:$0xff]
    %v219 = vld [vmem:[#allocation2 + $0x588] sm:$0xff]
    %v220 = vld [vmem:[#allocation2 + $0x590] sm:$0xff]
    %v221 = vld [vmem:[#allocation2 + $0x598] sm:$0xff]
    %v222 = vld [vmem:[#allocation2 + $0x5a0] sm:$0xff]
    %v223 = vld [vmem:[#allocation2 + $0x5a8] sm:$0xff]
    %v224 = vld [vmem:[#allocation2 + $0x5b0] sm:$0xff]
    %v225 = vld [vmem:[#allocation2 + $0x5b8] sm:$0xff]
    %v226 = vld [vmem:[#allocation2 + $0x5c0] sm:$0xff]
    %v227 = vld [vmem:[#allocation2 + $0x5c8] sm:$0xff]
    %v228 = vld [vmem:[#allocation2 + $0x5d0] sm:$0xff]
    %v229 = vld [vmem:[#allocation2 + $0x5d8] sm:$0xff]
    %v230 = vld [vmem:[#allocation2 + $0x5e0] sm:$0xff]
    %v231 = vld [vmem:[#allocation2 + $0x5e8] sm:$0xff]
    %v232 = vld [vmem:[#allocation2 + $0x5f0] sm:$0xff]
    %v233 = vld [vmem:[#allocation2 + $0x5f8] sm:$0xff]
    %v234 = vld [vmem:[#allocation2 + $0x600] sm:$0xff]
    %v235 = vld [vmem:[#allocation2 + $0x608] sm:$0xff]
    %v236 = vld [vmem:[#allocation2 + $0x610] sm:$0xff]
    %v237 = vld [vmem:[#allocation2 + $0x618] sm:$0xff]
    %v238 = vld [vmem:[%s2] sm:$0x3]
    %v240 = vlaneseq
    %v241 = vshrl.u32 %v240, 7
    %v242 = vsub.s32 0, %v241
    %v243 = vrot.slane %v238, %v242
    %v244 = vlaneseq
    %v245 = vshrl.u32 %v244, 7
    %v246 = vsub.s32 1, %v245
    %v247 = vrot.slane %v238, %v246
    %vm250 = vcmask 130048
    %v252 = vsel %vm250, %v41, 0
    %254 = vmatprep.subr.mxu0 %v43
    %255 = vmatpush1.msra.mxu0 %v42
    %256 = vmatprep.subr.mxu0 %v45
    %257 = vmatpush1.msra.mxu0 %v44
    %258 = vmatprep.subr.mxu0 %v47
    %259 = vmatpush1.msra.mxu0 %v46
    %260 = vmatprep.subr.mxu0 %v49
    %261 = vmatpush1.msra.mxu0 %v48
    %262 = vmatprep.subr.mxu0 %v51
    %263 = vmatpush1.msra.mxu0 %v50
    %264 = vmatprep.subr.mxu0 %v53
    %265 = vmatpush1.msra.mxu0 %v52
    %266 = vmatprep.subr.mxu0 %v55
    %267 = vmatpush1.msra.mxu0 %v54
    %268 = vmatprep.subr.mxu0 %v57
    %269 = vmatpush1.msra.mxu0 %v56
    %270 = vmatprep.subr.mxu0 %v59
    %271 = vmatpush1.msra.mxu0 %v58
    %272 = vmatprep.subr.mxu0 %v61
    %273 = vmatpush1.msra.mxu0 %v60
    %274 = vmatprep.subr.mxu0 %v63
    %275 = vmatpush1.msra.mxu0 %v62
    %276 = vmatprep.subr.mxu0 %v65
    %277 = vmatpush1.msra.mxu0 %v64
    %278 = vmatprep.subr.mxu0 %v67
    %279 = vmatpush1.msra.mxu0 %v66
    %280 = vmatprep.subr.mxu0 %v69
    %281 = vmatpush1.msra.mxu0 %v68
    %282 = vmatprep.subr.mxu0 %v71
    %283 = vmatpush1.msra.mxu0 %v70
    %284 = vmatprep.subr.mxu0 %v73
    %285 = vmatpush1.msra.mxu0 %v72
    %286 = vmatprep.subr.mxu0 %v75
    %287 = vmatpush1.msra.mxu0 %v74
    %288 = vmatprep.subr.mxu0 %v77
    %289 = vmatpush1.msra.mxu0 %v76
    %290 = vmatprep.subr.mxu0 %v79
    %291 = vmatpush1.msra.mxu0 %v78
    %292 = vmatprep.subr.mxu0 %v81
    %293 = vmatpush1.msra.mxu0 %v80
    %294 = vmatprep.subr.mxu0 %v83
    %295 = vmatpush1.msra.mxu0 %v82
    %296 = vmatprep.subr.mxu0 %v85
    %297 = vmatpush1.msra.mxu0 %v84
    %298 = vmatprep.subr.mxu0 %v87
    %299 = vmatpush1.msra.mxu0 %v86
    %300 = vmatprep.subr.mxu0 %v89
    %301 = vmatpush1.msra.mxu0 %v88
    %302 = vmatprep.subr.mxu0 %v91
    %303 = vmatpush1.msra.mxu0 %v90
    %304 = vmatprep.subr.mxu0 %v93
    %305 = vmatpush1.msra.mxu0 %v92
    %306 = vmatprep.subr.mxu0 %v95
    %307 = vmatpush1.msra.mxu0 %v94
    %308 = vmatprep.subr.mxu0 %v97
    %309 = vmatpush1.msra.mxu0 %v96
    %310 = vmatprep.subr.mxu0 %v99
    %311 = vmatpush1.msra.mxu0 %v98
    %312 = vmatprep.subr.mxu0 %v101
    %313 = vmatpush1.msra.mxu0 %v100
    %314 = vmatprep.subr.mxu0 %v103
    %315 = vmatpush1.msra.mxu0 %v102
    %316 = vmatprep.subr.mxu0 %v105
    %317 = vmatpush1.msra.mxu0 %v104
    %318 = vmatprep.mubr.f32.mxu0 %v36
    %319 = vmatmul.mubr.f32.gmra.mrb[0].mxu0 %v35
    %v320 = vpop.f32.mrb[0].mxu0
    %v321 = vadd.f32 %v243, %v320
    %v322 = vpop.f32.mrb[0].mxu0
    %v323 = vadd.f32 %v247, %v322
    %324 = vdwg.mxu0
    %325 = vmatprep.subr.mxu0 %v107
    %326 = vmatpush1.msra.mxu0 %v106
    %327 = vmatprep.subr.mxu0 %v109
    %328 = vmatpush1.msra.mxu0 %v108
    %329 = vmatprep.subr.mxu0 %v111
    %330 = vmatpush1.msra.mxu0 %v110
    %331 = vmatprep.subr.mxu0 %v113
    %332 = vmatpush1.msra.mxu0 %v112
    %333 = vmatprep.subr.mxu0 %v115
    %334 = vmatpush1.msra.mxu0 %v114
    %335 = vmatprep.subr.mxu0 %v117
    %336 = vmatpush1.msra.mxu0 %v116
    %337 = vmatprep.subr.mxu0 %v119
    %338 = vmatpush1.msra.mxu0 %v118
    %339 = vmatprep.subr.mxu0 %v121
    %340 = vmatpush1.msra.mxu0 %v120
    %341 = vmatprep.subr.mxu0 %v123
    %342 = vmatpush1.msra.mxu0 %v122
    %343 = vmatprep.subr.mxu0 %v125
    %344 = vmatpush1.msra.mxu0 %v124
    %345 = vmatprep.subr.mxu0 %v127
    %346 = vmatpush1.msra.mxu0 %v126
    %347 = vmatprep.subr.mxu0 %v129
    %348 = vmatpush1.msra.mxu0 %v128
    %349 = vmatprep.subr.mxu0 %v131
    %350 = vmatpush1.msra.mxu0 %v130
    %351 = vmatprep.subr.mxu0 %v133
    %352 = vmatpush1.msra.mxu0 %v132
    %353 = vmatprep.subr.mxu0 %v135
    %354 = vmatpush1.msra.mxu0 %v134
    %355 = vmatprep.subr.mxu0 %v137
    %356 = vmatpush1.msra.mxu0 %v136
    %357 = vmatprep.subr.mxu0 %v139
    %358 = vmatpush1.msra.mxu0 %v138
    %359 = vmatprep.subr.mxu0 %v141
    %360 = vmatpush1.msra.mxu0 %v140
    %361 = vmatprep.subr.mxu0 %v143
    %362 = vmatpush1.msra.mxu0 %v142
    %363 = vmatprep.subr.mxu0 %v145
    %364 = vmatpush1.msra.mxu0 %v144
    %365 = vmatprep.subr.mxu0 %v147
    %366 = vmatpush1.msra.mxu0 %v146
    %367 = vmatprep.subr.mxu0 %v149
    %368 = vmatpush1.msra.mxu0 %v148
    %369 = vmatprep.subr.mxu0 %v151
    %370 = vmatpush1.msra.mxu0 %v150
    %371 = vmatprep.subr.mxu0 %v153
    %372 = vmatpush1.msra.mxu0 %v152
    %373 = vmatprep.subr.mxu0 %v155
    %374 = vmatpush1.msra.mxu0 %v154
    %375 = vmatprep.subr.mxu0 %v157
    %376 = vmatpush1.msra.mxu0 %v156
    %377 = vmatprep.subr.mxu0 %v159
    %378 = vmatpush1.msra.mxu0 %v158
    %379 = vmatprep.subr.mxu0 %v161
    %380 = vmatpush1.msra.mxu0 %v160
    %381 = vmatprep.subr.mxu0 %v163
    %382 = vmatpush1.msra.mxu0 %v162
    %383 = vmatprep.subr.mxu0 %v165
    %384 = vmatpush1.msra.mxu0 %v164
    %385 = vmatprep.subr.mxu0 %v167
    %386 = vmatpush1.msra.mxu0 %v166
    %387 = vmatprep.subr.mxu0 %v169
    %388 = vmatpush1.msra.mxu0 %v168
    %389 = vmatprep.mubr.f32.mxu0 %v38
    %390 = vmatmul.mubr.f32.gmra.mrb[0].mxu0 %v37
    %v391 = vpop.f32.mrb[0].mxu0
    %v392 = vadd.f32 %v321, %v391
    %v393 = vpop.f32.mrb[0].mxu0
    %v394 = vadd.f32 %v323, %v393
    %395 = vdwg.mxu0
    %396 = vmatprep.subr.mxu0 %v171
    %397 = vmatpush1.msra.mxu0 %v170
    %398 = vmatprep.subr.mxu0 %v173
    %399 = vmatpush1.msra.mxu0 %v172
    %400 = vmatprep.subr.mxu0 %v175
    %401 = vmatpush1.msra.mxu0 %v174
    %402 = vmatprep.subr.mxu0 %v177
    %403 = vmatpush1.msra.mxu0 %v176
    %404 = vmatprep.subr.mxu0 %v179
    %405 = vmatpush1.msra.mxu0 %v178
    %406 = vmatprep.subr.mxu0 %v181
    %407 = vmatpush1.msra.mxu0 %v180
    %408 = vmatprep.subr.mxu0 %v183
    %409 = vmatpush1.msra.mxu0 %v182
    %410 = vmatprep.subr.mxu0 %v185
    %411 = vmatpush1.msra.mxu0 %v184
    %412 = vmatprep.subr.mxu0 %v187
    %413 = vmatpush1.msra.mxu0 %v186
    %414 = vmatprep.subr.mxu0 %v189
    %415 = vmatpush1.msra.mxu0 %v188
    %416 = vmatprep.subr.mxu0 %v191
    %417 = vmatpush1.msra.mxu0 %v190
    %418 = vmatprep.subr.mxu0 %v193
    %419 = vmatpush1.msra.mxu0 %v192
    %420 = vmatprep.subr.mxu0 %v195
    %421 = vmatpush1.msra.mxu0 %v194
    %422 = vmatprep.subr.mxu0 %v197
    %423 = vmatpush1.msra.mxu0 %v196
    %424 = vmatprep.subr.mxu0 %v199
    %425 = vmatpush1.msra.mxu0 %v198
    %426 = vmatprep.subr.mxu0 %v201
    %427 = vmatpush1.msra.mxu0 %v200
    %428 = vmatprep.subr.mxu0 %v203
    %429 = vmatpush1.msra.mxu0 %v202
    %430 = vmatprep.subr.mxu0 %v205
    %431 = vmatpush1.msra.mxu0 %v204
    %432 = vmatprep.subr.mxu0 %v207
    %433 = vmatpush1.msra.mxu0 %v206
    %434 = vmatprep.subr.mxu0 %v209
    %435 = vmatpush1.msra.mxu0 %v208
    %436 = vmatprep.subr.mxu0 %v211
    %437 = vmatpush1.msra.mxu0 %v210
    %438 = vmatprep.subr.mxu0 %v213
    %439 = vmatpush1.msra.mxu0 %v212
    %440 = vmatprep.subr.mxu0 %v215
    %441 = vmatpush1.msra.mxu0 %v214
    %442 = vmatprep.subr.mxu0 %v217
    %443 = vmatpush1.msra.mxu0 %v216
    %444 = vmatprep.subr.mxu0 %v219
    %445 = vmatpush1.msra.mxu0 %v218
    %446 = vmatprep.subr.mxu0 %v221
    %447 = vmatpush1.msra.mxu0 %v220
    %448 = vmatprep.subr.mxu0 %v223
    %449 = vmatpush1.msra.mxu0 %v222
    %450 = vmatprep.subr.mxu0 %v225
    %451 = vmatpush1.msra.mxu0 %v224
    %452 = vmatprep.subr.mxu0 %v227
    %453 = vmatpush1.msra.mxu0 %v226
    %454 = vmatprep.subr.mxu0 %v229
    %455 = vmatpush1.msra.mxu0 %v228
    %456 = vmatprep.subr.mxu0 %v231
    %457 = vmatpush1.msra.mxu0 %v230
    %458 = vmatprep.subr.mxu0 %v233
    %459 = vmatpush1.msra.mxu0 %v232
    %460 = vmatprep.mubr.f32.mxu0 %v40
    %461 = vmatmul.mubr.f32.gmra.mrb[0].mxu0 %v39
    %v462 = vpop.f32.mrb[0].mxu0
    %v463 = vadd.f32 %v392, %v462
    %v464 = vpop.f32.mrb[0].mxu0
    %v465 = vadd.f32 %v394, %v464
    %466 = vdwg.mxu0
    %467 = vmatprep.subr.mxu0 %v235
    %468 = vmatpush1.msra.mxu0 %v234
    %469 = vmatprep.subr.mxu0 %v237
    %470 = vmatpush1.msra.mxu0 %v236
    %471 = vmatprep.subr.mxu0 0.0
    %472 = vmatpush1.msra.mxu0 0.0
    %473 = vmatprep.subr.mxu0 0.0
    %474 = vmatpush1.msra.mxu0 0.0
    %475 = vmatprep.subr.mxu0 0.0
    %476 = vmatpush1.msra.mxu0 0.0
    %477 = vmatprep.subr.mxu0 0.0
    %478 = vmatpush1.msra.mxu0 0.0
    %479 = vmatprep.subr.mxu0 0.0
    %480 = vmatpush1.msra.mxu0 0.0
    %481 = vmatprep.subr.mxu0 0.0
    %482 = vmatpush1.msra.mxu0 0.0
    %483 = vmatprep.subr.mxu0 0.0
    %484 = vmatpush1.msra.mxu0 0.0
    %485 = vmatprep.subr.mxu0 0.0
    %486 = vmatpush1.msra.mxu0 0.0
    %487 = vmatprep.subr.mxu0 0.0
    %488 = vmatpush1.msra.mxu0 0.0
    %489 = vmatprep.subr.mxu0 0.0
    %490 = vmatpush1.msra.mxu0 0.0
    %491 = vmatprep.subr.mxu0 0.0
    %492 = vmatpush1.msra.mxu0 0.0
    %493 = vmatprep.subr.mxu0 0.0
    %494 = vmatpush1.msra.mxu0 0.0
    %495 = vmatprep.subr.mxu0 0.0
    %496 = vmatpush1.msra.mxu0 0.0
    %497 = vmatprep.subr.mxu0 0.0
    %498 = vmatpush1.msra.mxu0 0.0
    %499 = vmatprep.subr.mxu0 0.0
    %500 = vmatpush1.msra.mxu0 0.0
    %501 = vmatprep.subr.mxu0 0.0
    %502 = vmatpush1.msra.mxu0 0.0
    %503 = vmatprep.subr.mxu0 0.0
    %504 = vmatpush1.msra.mxu0 0.0
    %505 = vmatprep.subr.mxu0 0.0
    %506 = vmatpush1.msra.mxu0 0.0
    %507 = vmatprep.subr.mxu0 0.0
    %508 = vmatpush1.msra.mxu0 0.0
    %509 = vmatprep.subr.mxu0 0.0
    %510 = vmatpush1.msra.mxu0 0.0
    %511 = vmatprep.subr.mxu0 0.0
    %512 = vmatpush1.msra.mxu0 0.0
    %513 = vmatprep.subr.mxu0 0.0
    %514 = vmatpush1.msra.mxu0 0.0
    %515 = vmatprep.subr.mxu0 0.0
    %516 = vmatpush1.msra.mxu0 0.0
    %517 = vmatprep.subr.mxu0 0.0
    %518 = vmatpush1.msra.mxu0 0.0
    %519 = vmatprep.subr.mxu0 0.0
    %520 = vmatpush1.msra.mxu0 0.0
    %521 = vmatprep.subr.mxu0 0.0
    %522 = vmatpush1.msra.mxu0 0.0
    %523 = vmatprep.subr.mxu0 0.0
    %524 = vmatpush1.msra.mxu0 0.0
    %525 = vmatprep.subr.mxu0 0.0
    %526 = vmatpush1.msra.mxu0 0.0
    %527 = vmatprep.subr.mxu0 0.0
    %528 = vmatpush1.msra.mxu0 0.0
    %529 = vmatprep.subr.mxu0 0.0
    %530 = vmatpush1.msra.mxu0 0.0
    %531 = vmatprep.mubr.f32.mxu0 0.0
    %532 = vmatmul.mubr.f32.gmra.mrb[0].mxu0 %v252
    %v533 = vpop.f32.mrb[0].mxu0
    %v534 = vadd.f32 %v463, %v533
    %v535 = vpop.f32.mrb[0].mxu0
    %v536 = vadd.f32 %v465, %v535
    %537 = vdwg.mxu0
    %v538 = vmax.f32 %v534, 0.0
    %v539 = vmax.f32 %v536, 0.0
    %v540 = vld [vmem:[%s3] sm:$0xff]
    %v541 = vld [vmem:[%s3 + $0x8] sm:$0xff]
    %v542 = vld [vmem:[%s3 + $0x10] sm:$0xff]
    %v543 = vld [vmem:[%s3 + $0x18] sm:$0xff]
    %v544 = vld [vmem:[%s3 + $0x20] sm:$0xff]
    %v545 = vld [vmem:[%s3 + $0x28] sm:$0xff]
    %v546 = vld [vmem:[%s3 + $0x30] sm:$0xff]
    %v547 = vld [vmem:[%s3 + $0x38] sm:$0xff]
    %v548 = vld [vmem:[%s3 + $0x40] sm:$0xff]
    %v549 = vld [vmem:[%s3 + $0x48] sm:$0xff]
    %v550 = vld [vmem:[%s3 + $0x50] sm:$0xff]
    %v551 = vld [vmem:[%s3 + $0x58] sm:$0xff]
    %v552 = vld [vmem:[%s3 + $0x60] sm:$0xff]
    %v553 = vld [vmem:[%s3 + $0x68] sm:$0xff]
    %v554 = vld [vmem:[%s3 + $0x70] sm:$0xff]
    %v555 = vld [vmem:[%s3 + $0x78] sm:$0xff]
    %v556 = vld [vmem:[%s3 + $0x80] sm:$0xff]
    %v557 = vld [vmem:[%s3 + $0x88] sm:$0xff]
    %v558 = vld [vmem:[%s3 + $0x90] sm:$0xff]
    %v559 = vld [vmem:[%s3 + $0x98] sm:$0xff]
    %v560 = vld [vmem:[%s3 + $0xa0] sm:$0xff]
    %v561 = vld [vmem:[%s3 + $0xa8] sm:$0xff]
    %v562 = vld [vmem:[%s3 + $0xb0] sm:$0xff]
    %v563 = vld [vmem:[%s3 + $0xb8] sm:$0xff]
    %v564 = vld [vmem:[%s3 + $0xc0] sm:$0xff]
    %v565 = vld [vmem:[%s3 + $0xc8] sm:$0xff]
    %v566 = vld [vmem:[%s3 + $0xd0] sm:$0xff]
    %v567 = vld [vmem:[%s3 + $0xd8] sm:$0xff]
    %v568 = vld [vmem:[%s3 + $0xe0] sm:$0xff]
    %v569 = vld [vmem:[%s3 + $0xe8] sm:$0xff]
    %v570 = vld [vmem:[%s3 + $0xf0] sm:$0xff]
    %v571 = vld [vmem:[%s3 + $0xf8] sm:$0xff]
    %v572 = vld [vmem:[%s3 + $0x100] sm:$0xff]
    %v573 = vld [vmem:[%s3 + $0x108] sm:$0xff]
    %v574 = vld [vmem:[%s3 + $0x110] sm:$0xff]
    %v575 = vld [vmem:[%s3 + $0x118] sm:$0xff]
    %v576 = vld [vmem:[%s3 + $0x120] sm:$0xff]
    %v577 = vld [vmem:[%s3 + $0x128] sm:$0xff]
    %v578 = vld [vmem:[%s3 + $0x130] sm:$0xff]
    %v579 = vld [vmem:[%s3 + $0x138] sm:$0xff]
    %v580 = vld [vmem:[%s3 + $0x140] sm:$0xff]
    %v581 = vld [vmem:[%s3 + $0x148] sm:$0xff]
    %v582 = vld [vmem:[%s3 + $0x150] sm:$0xff]
    %v583 = vld [vmem:[%s3 + $0x158] sm:$0xff]
    %v584 = vld [vmem:[%s3 + $0x160] sm:$0xff]
    %v585 = vld [vmem:[%s3 + $0x168] sm:$0xff]
    %v586 = vld [vmem:[%s3 + $0x170] sm:$0xff]
    %v587 = vld [vmem:[%s3 + $0x178] sm:$0xff]
    %v588 = vld [vmem:[%s3 + $0x180] sm:$0xff]
    %v589 = vld [vmem:[%s3 + $0x188] sm:$0xff]
    %v590 = vld [vmem:[%s3 + $0x190] sm:$0xff]
    %v591 = vld [vmem:[%s3 + $0x198] sm:$0xff]
    %v592 = vld [vmem:[%s3 + $0x1a0] sm:$0xff]
    %v593 = vld [vmem:[%s3 + $0x1a8] sm:$0xff]
    %v594 = vld [vmem:[%s3 + $0x1b0] sm:$0xff]
    %v595 = vld [vmem:[%s3 + $0x1b8] sm:$0xff]
    %v596 = vld [vmem:[%s3 + $0x1c0] sm:$0xff]
    %v597 = vld [vmem:[%s3 + $0x1c8] sm:$0xff]
    %v598 = vld [vmem:[%s3 + $0x1d0] sm:$0xff]
    %v599 = vld [vmem:[%s3 + $0x1d8] sm:$0xff]
    %v600 = vld [vmem:[%s3 + $0x1e0] sm:$0xff]
    %v601 = vld [vmem:[%s3 + $0x1e8] sm:$0xff]
    %v602 = vld [vmem:[%s3 + $0x1f0] sm:$0xff]
    %v603 = vld [vmem:[%s3 + $0x1f8] sm:$0xff]
    %v604 = vld [vmem:[%s4] sm:$0x3]
    %v606 = vlaneseq
    %v607 = vshrl.u32 %v606, 7
    %v608 = vsub.s32 0, %v607
    %v609 = vrot.slane %v604, %v608
    %v610 = vlaneseq
    %v611 = vshrl.u32 %v610, 7
    %v612 = vsub.s32 1, %v611
    %v613 = vrot.slane %v604, %v612
    %616 = vmatprep.subr.mxu0 %v541
    %617 = vmatpush1.msra.mxu0 %v540
    %618 = vmatprep.subr.mxu0 %v543
    %619 = vmatpush1.msra.mxu0 %v542
    %620 = vmatprep.subr.mxu0 %v545
    %621 = vmatpush1.msra.mxu0 %v544
    %622 = vmatprep.subr.mxu0 %v547
    %623 = vmatpush1.msra.mxu0 %v546
    %624 = vmatprep.subr.mxu0 %v549
    %625 = vmatpush1.msra.mxu0 %v548
    %626 = vmatprep.subr.mxu0 %v551
    %627 = vmatpush1.msra.mxu0 %v550
    %628 = vmatprep.subr.mxu0 %v553
    %629 = vmatpush1.msra.mxu0 %v552
    %630 = vmatprep.subr.mxu0 %v555
    %631 = vmatpush1.msra.mxu0 %v554
    %632 = vmatprep.subr.mxu0 %v557
    %633 = vmatpush1.msra.mxu0 %v556
    %634 = vmatprep.subr.mxu0 %v559
    %635 = vmatpush1.msra.mxu0 %v558
    %636 = vmatprep.subr.mxu0 %v561
    %637 = vmatpush1.msra.mxu0 %v560
    %638 = vmatprep.subr.mxu0 %v563
    %639 = vmatpush1.msra.mxu0 %v562
    %640 = vmatprep.subr.mxu0 %v565
    %641 = vmatpush1.msra.mxu0 %v564
    %642 = vmatprep.subr.mxu0 %v567
    %643 = vmatpush1.msra.mxu0 %v566
    %644 = vmatprep.subr.mxu0 %v569
    %645 = vmatpush1.msra.mxu0 %v568
    %646 = vmatprep.subr.mxu0 %v571
    %647 = vmatpush1.msra.mxu0 %v570
    %648 = vmatprep.subr.mxu0 %v573
    %649 = vmatpush1.msra.mxu0 %v572
    %650 = vmatprep.subr.mxu0 %v575
    %651 = vmatpush1.msra.mxu0 %v574
    %652 = vmatprep.subr.mxu0 %v577
    %653 = vmatpush1.msra.mxu0 %v576
    %654 = vmatprep.subr.mxu0 %v579
    %655 = vmatpush1.msra.mxu0 %v578
    %656 = vmatprep.subr.mxu0 %v581
    %657 = vmatpush1.msra.mxu0 %v580
    %658 = vmatprep.subr.mxu0 %v583
    %659 = vmatpush1.msra.mxu0 %v582
    %660 = vmatprep.subr.mxu0 %v585
    %661 = vmatpush1.msra.mxu0 %v584
    %662 = vmatprep.subr.mxu0 %v587
    %663 = vmatpush1.msra.mxu0 %v586
    %664 = vmatprep.subr.mxu0 %v589
    %665 = vmatpush1.msra.mxu0 %v588
    %666 = vmatprep.subr.mxu0 %v591
    %667 = vmatpush1.msra.mxu0 %v590
    %668 = vmatprep.subr.mxu0 %v593
    %669 = vmatpush1.msra.mxu0 %v592
    %670 = vmatprep.subr.mxu0 %v595
    %671 = vmatpush1.msra.mxu0 %v594
    %672 = vmatprep.subr.mxu0 %v597
    %673 = vmatpush1.msra.mxu0 %v596
    %674 = vmatprep.subr.mxu0 %v599
    %675 = vmatpush1.msra.mxu0 %v598
    %676 = vmatprep.subr.mxu0 %v601
    %677 = vmatpush1.msra.mxu0 %v600
    %678 = vmatprep.subr.mxu0 %v603
    %679 = vmatpush1.msra.mxu0 %v602
    %680 = vmatprep.mubr.f32.mxu0 %v539
    %681 = vmatmul.mubr.f32.gmra.mrb[0].mxu0 %v538
    %v682 = vpop.f32.mrb[0].mxu0
    %v683 = vadd.f32 %v609, %v682
    %v684 = vpop.f32.mrb[0].mxu0
    %v685 = vadd.f32 %v613, %v684
    %686 = vdwg.mxu0
    %v687 = vmax.f32 %v683, 0.0
    %v688 = vmax.f32 %v685, 0.0
    %689 = vst [vmem:[#allocation5] sm:$0xff] %v687
    %690 = vst [vmem:[#allocation5 + $0x8] sm:$0xff] %v688
    // Predicated region
    $region26: #{mlp_header_forward.1} parent=1 // pred_check
      _
    $region27: #{mlp_header_forward.1} parent=1 // pred_check_branch
      %692 = sbr.rel (0) target = $region29
    $region28: #{mlp_header_forward.1} parent=1 // pred_region
      %s694 = ssub.s32 256, 256
      %695 = vsyncadd [#allocation4], %s694
      %s697 = sshll.u32 [#allocation5], 4
      %s698 = int_to_ptr.vmem [resolvable:$true] %s697
      %700 = dma.vmem_to_hbm [thread:$0]  %s698, 256, %s5, [#allocation4]
    $region29: #{mlp_header_forward.1} parent=1 // pred_fallthru
      _
    // Predicated region
    $region30: #{mlp_header_forward.1} parent=1 // pred_check
      _
    $region31: #{mlp_header_forward.1} parent=1 // pred_check_branch
      %702 = sbr.rel (0) target = $region33
    $region32: #{mlp_header_forward.1} parent=1 // pred_region
      %703 = dma.done [#allocation4], 256
    $region33: #{mlp_header_forward.1} parent=1 // pred_fallthru
      _
    %704 = vsyncpa [#allocation3], 1
    %705 = vsyncpa [#allocation4], 1

</llo_original>
